<compile_context>
chip_gen: v6e
topology: v6e:2x2x1
jax: 0.10.0
libtpu: 0.0.40
codegen_flags: <defaults>
</compile_context>

<pallas_src>
import functools

import jax
import jax.numpy as jnp
from jax.experimental import pallas as pl
from jax.experimental.pallas import tpu as pltpu


def _round_up(n, m):
    return ((n + m - 1) // m) * m


def ffnn_kernel(x_ref, w1_ref, b1_ref, w2_ref, b2_ref, w3_ref, b3_ref, oT_ref,
                *, lc):
    # Parameters are tiny and VMEM-resident; load once per grid step.
    w1 = w1_ref[...]                            # (50, D)  bf16
    b1 = b1_ref[...]                            # (50, 1)  f32
    w2 = w2_ref[...]                            # (25, 50) bf16
    b2 = b2_ref[...]                            # (25, 1)  f32
    w3 = w3_ref[...]                            # (1, 25)  bf16
    b3 = b3_ref[...]                            # (1, 1)   f32

    tb = x_ref.shape[0]
    # Lane-chunked evaluation keeps the inter-layer activations small
    # (no (50, TB)/(25, TB) f32 spill at large TB).
    for c in range(tb // lc):                   # static Python unroll
        xc = x_ref[pl.ds(c * lc, lc), :].astype(jnp.bfloat16)     # (lc, D)
        # Layer 1: (50, D) @ (D, lc) -> (50, lc); bf16 MXU, f32 accumulate.
        h1 = jnp.dot(w1, xc.T, preferred_element_type=jnp.float32)
        h1 = jnp.maximum(h1 + b1, 0.0)
        # Layer 2: (25, 50) @ (50, lc) -> (25, lc)
        h2 = jnp.dot(w2, h1.astype(jnp.bfloat16),
                     preferred_element_type=jnp.float32)
        h2 = jnp.maximum(h2 + b2, 0.0)
        # Layer 3: (1, 25) @ (25, lc) -> (1, lc); lane-dense output row.
        o = jnp.dot(w3, h2.astype(jnp.bfloat16),
                    preferred_element_type=jnp.float32) + b3
        oT_ref[:, pl.ds(c * lc, lc)] = o


@functools.partial(jax.jit, static_argnames=("tb",))
def ffnn_forward(x, params, *, tb=8192):
    """x: (B, D) float32.  params: PyTorch-layout (out, in) weights, (out, 1) biases."""
    B, D = x.shape
    B128 = _round_up(B, 128)

    # Batch tile: big by default (amortize per-step overhead), lane-aligned,
    # never larger than the padded batch.
    TB = _round_up(min(int(tb), B128), 128)
    # VMEM budget for the double-buffered x tile (conservative: also fits v7x).
    vmem_x_budget = 8 * 1024 * 1024
    tb_vmem_cap = max(128, (vmem_x_budget // (2 * D * 4)) // 128 * 128)
    TB = min(TB, tb_vmem_cap)
    # v7x megacore: when the batch spans >=2 lane tiles, keep >=2 grid steps so
    # the "parallel" axis can shard across both TensorCores.
    if B128 >= 2 * 128:
        TB = min(TB, _round_up((B128 + 1) // 2, 128))

    grid_b = (B128 + TB - 1) // TB
    B_pad = grid_b * TB

    # In-kernel lane-chunk size (must divide TB; TB is a multiple of 128).
    LC = 512
    while TB % LC:
        LC //= 2

    # TODO(synk): replace the tail zero-pad with in-kernel masking so the
    # wrapper never copies x; padded rows only produce garbage in output
    # columns that are sliced off below.
    if B_pad != B:
        x = jnp.pad(x, ((0, B_pad - B), (0, 0)))

    # Weights in bf16 (MXU operands); biases stay f32.
    w1 = params["w1"].astype(jnp.bfloat16)      # (50, D)
    w2 = params["w2"].astype(jnp.bfloat16)      # (25, 50)
    w3 = params["w3"].astype(jnp.bfloat16)      # (1, 25)
    b1, b2, b3 = params["b1"], params["b2"], params["b3"]     # (out, 1) f32

    # Parameters: full-array blocks with constant index_map -> fetched once,
    # VMEM-resident across all grid steps.
    resident = lambda a: pl.BlockSpec(a.shape, lambda i: (0, 0))

    outT = pl.pallas_call(
        functools.partial(ffnn_kernel, lc=LC),
        out_shape=jax.ShapeDtypeStruct((1, B_pad), jnp.float32),
        grid=(grid_b,),
        in_specs=[
            pl.BlockSpec((TB, D), lambda i: (i, 0)),   # contiguous x tiles
            resident(w1), resident(b1),
            resident(w2), resident(b2),
            resident(w3), resident(b3),
        ],
        out_specs=pl.BlockSpec((1, TB), lambda i: (0, i)),  # lane-dense output
        compiler_params=pltpu.CompilerParams(
            dimension_semantics=("parallel",),       # megacore sharding on v7x
        ),
    )(x, w1, b1, w2, b2, w3, b3)

    return outT[0, :B].reshape(B, 1)


def init_params(key, input_dim):
    """PyTorch nn.Linear default init: uniform(+-1/sqrt(fan_in)), (out, in) weights."""
    def linear(k, fan_in, fan_out):
        kw, kb = jax.random.split(k)
        bound = 1.0 / float(fan_in) ** 0.5
        w = jax.random.uniform(kw, (fan_out, fan_in), jnp.float32, -bound, bound)
        b = jax.random.uniform(kb, (fan_out, 1), jnp.float32, -bound, bound)
        return w, b

    k1, k2, k3 = jax.random.split(key, 3)
    w1, b1 = linear(k1, input_dim, 50)
    w2, b2 = linear(k2, 50, 25)
    w3, b3 = linear(k3, 25, 1)
    return {"w1": w1, "b1": b1, "w2": w2, "b2": b2, "w3": w3, "b3": b3}


def ffnn_ref(x, p):
    """Pure-JAX reference with the same bf16 operand rounding as the kernel."""
    bf = lambda a: a.astype(jnp.bfloat16).astype(jnp.float32)
    h1 = jnp.maximum(bf(x) @ bf(p["w1"]).T + p["b1"].T, 0.0)
    h2 = jnp.maximum(bf(h1) @ bf(p["w2"]).T + p["b2"].T, 0.0)
    return bf(h2) @ bf(p["w3"]).T + p["b3"].T


if __name__ == "__main__":
    key = jax.random.PRNGKey(0)
    kx, kx2, kx3, kp = jax.random.split(key, 4)

    batch, input_dim = 8, 32
    params = init_params(kp, input_dim)

    # Check 1: tiny batch (single tile, padded).
    x = jax.random.normal(kx, (batch, input_dim), jnp.float32)
    out = jax.block_until_ready(ffnn_forward(x, params))
    ref = ffnn_ref(x, params)
    assert out.shape == (batch, 1)
    assert jnp.allclose(out, ref, atol=1e-3, rtol=1e-3), float(
        jnp.max(jnp.abs(out - ref)))

    # Check 2: non-multiple-of-tile batch + multi-step grid (padding path).
    x2 = jax.random.normal(kx2, (300, input_dim), jnp.float32)
    out2 = jax.block_until_ready(ffnn_forward(x2, params, tb=128))
    ref2 = ffnn_ref(x2, params)
    assert out2.shape == (300, 1)
    assert jnp.allclose(out2, ref2, atol=1e-3, rtol=1e-3), float(
        jnp.max(jnp.abs(out2 - ref2)))

    # Check 3: default (large) tile path with the >=2-grid-step megacore cap.
    x3 = jax.random.normal(kx3, (1000, input_dim), jnp.float32)
    out3 = jax.block_until_ready(ffnn_forward(x3, params))
    ref3 = ffnn_ref(x3, params)
    assert out3.shape == (1000, 1)
    assert jnp.allclose(out3, ref3, atol=1e-3, rtol=1e-3), float(
        jnp.max(jnp.abs(out3 - ref3)))

    print("KERNEL_OK")
</pallas_src>

<mosaic_0001>
module attributes {stable_mosaic.version = 11 : i64} {
  func.func @ffnn_kernel(%arg0: i32, %arg1: memref<128x32xf32, #tpu.memory_space<vmem>>, %arg2: memref<50x32xbf16, #tpu.memory_space<vmem>>, %arg3: memref<50x1xf32, #tpu.memory_space<vmem>>, %arg4: memref<25x50xbf16, #tpu.memory_space<vmem>>, %arg5: memref<25x1xf32, #tpu.memory_space<vmem>>, %arg6: memref<1x25xbf16, #tpu.memory_space<vmem>>, %arg7: memref<1x1xf32, #tpu.memory_space<vmem>>, %arg8: memref<1x128xf32, #tpu.memory_space<vmem>>) attributes {dimension_semantics = [#tpu.dimension_semantics<parallel>], iteration_bounds = array<i64: 1>, scalar_prefetch = 0 : i64, scratch_operands = 0 : i64, tpu.core_type = #tpu.core_type<tc>, window_params = [{transform_indices = @transform_0, window_bounds = array<i64: 128, 32>}, {pipeline_mode = #tpu.pipeline_mode<synchronous>, transform_indices = @transform_1, window_bounds = array<i64: 50, 32>}, {pipeline_mode = #tpu.pipeline_mode<synchronous>, transform_indices = @transform_2, window_bounds = array<i64: 50, 1>}, {pipeline_mode = #tpu.pipeline_mode<synchronous>, transform_indices = @transform_3, window_bounds = array<i64: 25, 50>}, {pipeline_mode = #tpu.pipeline_mode<synchronous>, transform_indices = @transform_4, window_bounds = array<i64: 25, 1>}, {pipeline_mode = #tpu.pipeline_mode<synchronous>, transform_indices = @transform_5, window_bounds = array<i64: 1, 25>}, {pipeline_mode = #tpu.pipeline_mode<synchronous>, transform_indices = @transform_6, window_bounds = array<i64: 1, 1>}, {transform_indices = @transform_7, window_bounds = array<i64: 1, 128>}]} {
    %c0 = arith.constant 0 : index
    %c0_0 = arith.constant 0 : index
    %0 = vector.load %arg2[%c0, %c0_0] : memref<50x32xbf16, #tpu.memory_space<vmem>>, vector<50x32xbf16>
    %c0_1 = arith.constant 0 : index
    %c0_2 = arith.constant 0 : index
    %1 = vector.load %arg3[%c0_1, %c0_2] : memref<50x1xf32, #tpu.memory_space<vmem>>, vector<50x1xf32>
    %c0_3 = arith.constant 0 : index
    %c0_4 = arith.constant 0 : index
    %2 = vector.load %arg4[%c0_3, %c0_4] : memref<25x50xbf16, #tpu.memory_space<vmem>>, vector<25x50xbf16>
    %c0_5 = arith.constant 0 : index
    %c0_6 = arith.constant 0 : index
    %3 = vector.load %arg5[%c0_5, %c0_6] : memref<25x1xf32, #tpu.memory_space<vmem>>, vector<25x1xf32>
    %c0_7 = arith.constant 0 : index
    %c0_8 = arith.constant 0 : index
    %4 = vector.load %arg6[%c0_7, %c0_8] : memref<1x25xbf16, #tpu.memory_space<vmem>>, vector<1x25xbf16>
    %c0_9 = arith.constant 0 : index
    %c0_10 = arith.constant 0 : index
    %5 = vector.load %arg7[%c0_9, %c0_10] : memref<1x1xf32, #tpu.memory_space<vmem>>, vector<1x1xf32>
    %c0_11 = arith.constant 0 : index
    %c0_12 = arith.constant 0 : index
    %6 = vector.load %arg1[%c0_11, %c0_12] : memref<128x32xf32, #tpu.memory_space<vmem>>, vector<128x32xf32>
    %7 = arith.truncf %6 : vector<128x32xf32> to vector<128x32xbf16>
    %8 = tpu.transpose %7, [1, 0] : vector<128x32xbf16> -> vector<32x128xbf16>
    %cst = arith.constant dense<0.000000e+00> : vector<50x128xf32>
    %9 = tpu.matmul %0, %8, %cst {dimension_numbers = #tpu.dot_dimension_numbers<[1], [0], [0], [1], [0, 0, 1, 1], [], []>} : vector<50x32xbf16>, vector<32x128xbf16>, vector<50x128xf32> -> vector<50x128xf32>
    %10 = vector.broadcast %1 : vector<50x1xf32> to vector<50x128xf32>
    %11 = arith.addf %9, %10 : vector<50x128xf32>
    %cst_13 = arith.constant 0.000000e+00 : f32
    %12 = vector.broadcast %cst_13 : f32 to vector<50x128xf32>
    %13 = arith.maximumf %11, %12 : vector<50x128xf32>
    %14 = arith.truncf %13 : vector<50x128xf32> to vector<50x128xbf16>
    %cst_14 = arith.constant dense<0.000000e+00> : vector<25x128xf32>
    %15 = tpu.matmul %2, %14, %cst_14 {dimension_numbers = #tpu.dot_dimension_numbers<[1], [0], [0], [1], [0, 0, 1, 1], [], []>} : vector<25x50xbf16>, vector<50x128xbf16>, vector<25x128xf32> -> vector<25x128xf32>
    %16 = vector.broadcast %3 : vector<25x1xf32> to vector<25x128xf32>
    %17 = arith.addf %15, %16 : vector<25x128xf32>
    %cst_15 = arith.constant 0.000000e+00 : f32
    %18 = vector.broadcast %cst_15 : f32 to vector<25x128xf32>
    %19 = arith.maximumf %17, %18 : vector<25x128xf32>
    %20 = arith.truncf %19 : vector<25x128xf32> to vector<25x128xbf16>
    %cst_16 = arith.constant dense<0.000000e+00> : vector<1x128xf32>
    %21 = tpu.matmul %4, %20, %cst_16 {dimension_numbers = #tpu.dot_dimension_numbers<[1], [0], [0], [1], [0, 0, 1, 1], [], []>} : vector<1x25xbf16>, vector<25x128xbf16>, vector<1x128xf32> -> vector<1x128xf32>
    %22 = vector.broadcast %5 : vector<1x1xf32> to vector<1x128xf32>
    %23 = arith.addf %21, %22 : vector<1x128xf32>
    %c0_17 = arith.constant 0 : index
    %c0_18 = arith.constant 0 : index
    %24 = vector.load %arg8[%c0_17, %c0_18] : memref<1x128xf32, #tpu.memory_space<vmem>>, vector<1x128xf32>
    tpu.vector_store %arg8[%c0_17, %c0_18], %23 {strides = array<i32>} : memref<1x128xf32, #tpu.memory_space<vmem>>, vector<1x128xf32>,
    return
  }
  func.func @transform_0(%arg0: i32) -> (i32, i32) {
    %c0_i32 = arith.constant 0 : i32
    %c0_i32_0 = arith.constant 0 : i32
    return %arg0, %c0_i32 : i32, i32
  }
  func.func @transform_1(%arg0: i32) -> (i32, i32) {
    %c0_i32 = arith.constant 0 : i32
    %c0_i32_0 = arith.constant 0 : i32
    %c0_i32_1 = arith.constant 0 : i32
    return %c0_i32, %c0_i32_0 : i32, i32
  }
  func.func @transform_2(%arg0: i32) -> (i32, i32) {
    %c0_i32 = arith.constant 0 : i32
    %c0_i32_0 = arith.constant 0 : i32
    %c0_i32_1 = arith.constant 0 : i32
    return %c0_i32, %c0_i32_0 : i32, i32
  }
  func.func @transform_3(%arg0: i32) -> (i32, i32) {
    %c0_i32 = arith.constant 0 : i32
    %c0_i32_0 = arith.constant 0 : i32
    %c0_i32_1 = arith.constant 0 : i32
    return %c0_i32, %c0_i32_0 : i32, i32
  }
  func.func @transform_4(%arg0: i32) -> (i32, i32) {
    %c0_i32 = arith.constant 0 : i32
    %c0_i32_0 = arith.constant 0 : i32
    %c0_i32_1 = arith.constant 0 : i32
    return %c0_i32, %c0_i32_0 : i32, i32
  }
  func.func @transform_5(%arg0: i32) -> (i32, i32) {
    %c0_i32 = arith.constant 0 : i32
    %c0_i32_0 = arith.constant 0 : i32
    %c0_i32_1 = arith.constant 0 : i32
    return %c0_i32, %c0_i32_0 : i32, i32
  }
  func.func @transform_6(%arg0: i32) -> (i32, i32) {
    %c0_i32 = arith.constant 0 : i32
    %c0_i32_0 = arith.constant 0 : i32
    %c0_i32_1 = arith.constant 0 : i32
    return %c0_i32, %c0_i32_0 : i32, i32
  }
  func.func @transform_7(%arg0: i32) -> (i32, i32) {
    %c0_i32 = arith.constant 0 : i32
    %c0_i32_0 = arith.constant 0 : i32
    return %c0_i32, %arg0 : i32, i32
  }
}

</mosaic_0001>

<llo_original>
// kernel: ffnn_forward.1
$region0: #{ffnn_forward.1}
  #allocation0 [shape = 'u32[]', space=smem, size = 0x4, offset = 0x4, fixed_abs, tag = 'smem constant byte address 0x4 - core index']
  #allocation1 [shape = 'u32[144,128]{1,0:T(1,128)}', space=vmem, size = 0x12000, scoped, tag = 'internal scratch']
  #allocation2 [shape = 'f32[1,1]{1,0:T(1,128)S(1)}', space=vmem, size = 0x200, scoped, tag = 'scoped memory for ffnn_forward.1']
  %s0 = inlined_call_operand.vmem [shape: f32[128,32], index: 0, kind: input, shape index: {}]
  %s1 = inlined_call_operand.vmem [shape: bf16[50,32], index: 1, kind: input, shape index: {}]
  %s2 = inlined_call_operand.vmem [shape: f32[50,1], index: 2, kind: input, shape index: {}]
  %s3 = inlined_call_operand.vmem [shape: bf16[25,50], index: 3, kind: input, shape index: {}]
  %s4 = inlined_call_operand.vmem [shape: f32[25,1], index: 4, kind: input, shape index: {}]
  %s5 = inlined_call_operand.vmem [shape: bf16[1,25], index: 5, kind: input, shape index: {}]
  %s6 = inlined_call_operand.<no memory space> [shape: f32[1,1], index: 6, kind: input, shape index: {}]
  %s7 = inlined_call_operand.vmem [shape: f32[1,128], index: 7, kind: output, shape index: {}]
  %s8 = sld [smem:[#allocation0]]
  $region38: #{ffnn_forward.1} parent=0
    _
  %s10 = ssub.s32 1, %s8
  %s11 = scalar_select 0, %s10, %s8
  %v12 = vstv %s6
  %13 = vst [vmem:[#allocation2] sm:$0x1] %v12
  // Predicated region
  $region2: #{ffnn_forward.1} parent=0 // pred_check
    _
  $region3: #{ffnn_forward.1} parent=0 // pred_check_branch
    %15 = sbr.rel (0) target = $region5
  $region4: #{ffnn_forward.1} parent=0 // pred_region
    _
  $region5: #{ffnn_forward.1} parent=0 // pred_fallthru
    _
  // Predicated region
  $region6: #{ffnn_forward.1} parent=0 // pred_check
    _
  $region7: #{ffnn_forward.1} parent=0 // pred_check_branch
    %17 = sbr.rel (0) target = $region9
  $region8: #{ffnn_forward.1} parent=0 // pred_region
    _
  $region9: #{ffnn_forward.1} parent=0 // pred_fallthru
    _
  // Predicated region
  $region10: #{ffnn_forward.1} parent=0 // pred_check
    _
  $region11: #{ffnn_forward.1} parent=0 // pred_check_branch
    %19 = sbr.rel (0) target = $region13
  $region12: #{ffnn_forward.1} parent=0 // pred_region
    _
  $region13: #{ffnn_forward.1} parent=0 // pred_fallthru
    _
  // Predicated region
  $region14: #{ffnn_forward.1} parent=0 // pred_check
    _
  $region15: #{ffnn_forward.1} parent=0 // pred_check_branch
    %21 = sbr.rel (0) target = $region17
  $region16: #{ffnn_forward.1} parent=0 // pred_region
    _
  $region17: #{ffnn_forward.1} parent=0 // pred_fallthru
    _
  // Predicated region
  $region18: #{ffnn_forward.1} parent=0 // pred_check
    _
  $region19: #{ffnn_forward.1} parent=0 // pred_check_branch
    %23 = sbr.rel (0) target = $region21
  $region20: #{ffnn_forward.1} parent=0 // pred_region
    _
  $region21: #{ffnn_forward.1} parent=0 // pred_fallthru
    _
  // Predicated region
  $region22: #{ffnn_forward.1} parent=0 // pred_check
    _
  $region23: #{ffnn_forward.1} parent=0 // pred_check_branch
    %25 = sbr.rel (0) target = $region25
  $region24: #{ffnn_forward.1} parent=0 // pred_region
    _
  $region25: #{ffnn_forward.1} parent=0 // pred_fallthru
    _
  // Predicated region
  $region26: #{ffnn_forward.1} parent=0 // pred_check
    _
  $region27: #{ffnn_forward.1} parent=0 // pred_check_branch
    %27 = sbr.rel (0) target = $region29
  $region28: #{ffnn_forward.1} parent=0 // pred_region
    _
  $region29: #{ffnn_forward.1} parent=0 // pred_fallthru
    _
  %v29 = vld [vmem:[%s1] sm:$0xf]
  %v30 = vld [vmem:[%s1 + $0x4] sm:$0xf]
  %v31 = vld [vmem:[%s1 + $0x8] sm:$0xf]
  %v32 = vld [vmem:[%s1 + $0xc] sm:$0xf]
  %v33 = vld [vmem:[%s1 + $0x10] sm:$0xf]
  %v34 = vld [vmem:[%s1 + $0x14] sm:$0xf]
  %v35 = vld [vmem:[%s1 + $0x18] sm:$0x1]
  %v36 = vld [vmem:[%s2] sm:$0xff]
  %v37 = vld [vmem:[%s2 + $0x8] sm:$0xff]
  %v38 = vld [vmem:[%s2 + $0x10] sm:$0xff]
  %v39 = vld [vmem:[%s2 + $0x18] sm:$0xff]
  %v40 = vld [vmem:[%s2 + $0x20] sm:$0xff]
  %v41 = vld [vmem:[%s2 + $0x28] sm:$0xff]
  %v42 = vld [vmem:[%s2 + $0x30] sm:$0x3]
  %v43 = vld [vmem:[%s3] sm:$0xf]
  %v44 = vld [vmem:[%s3 + $0x4] sm:$0xf]
  %v45 = vld [vmem:[%s3 + $0x8] sm:$0xf]
  %v46 = vld [vmem:[%s3 + $0xc] sm:$0x1]
  %v47 = vld [vmem:[%s4] sm:$0xff]
  %v48 = vld [vmem:[%s4 + $0x8] sm:$0xff]
  %v49 = vld [vmem:[%s4 + $0x10] sm:$0xff]
  %v50 = vld [vmem:[%s4 + $0x18] sm:$0x1]
  %v51 = vld [vmem:[%s5] sm:$0x1]
  %v52 = vld [vmem:[#allocation2] sm:$0x1]
  %v53 = vld [vmem:[%s0] sm:$0xff]
  %v54 = vld [vmem:[%s0 + $0x8] sm:$0xff]
  %v55 = vld [vmem:[%s0 + $0x10] sm:$0xff]
  %v56 = vld [vmem:[%s0 + $0x18] sm:$0xff]
  %v57 = vld [vmem:[%s0 + $0x20] sm:$0xff]
  %v58 = vld [vmem:[%s0 + $0x28] sm:$0xff]
  %v59 = vld [vmem:[%s0 + $0x30] sm:$0xff]
  %v60 = vld [vmem:[%s0 + $0x38] sm:$0xff]
  %v61 = vld [vmem:[%s0 + $0x40] sm:$0xff]
  %v62 = vld [vmem:[%s0 + $0x48] sm:$0xff]
  %v63 = vld [vmem:[%s0 + $0x50] sm:$0xff]
  %v64 = vld [vmem:[%s0 + $0x58] sm:$0xff]
  %v65 = vld [vmem:[%s0 + $0x60] sm:$0xff]
  %v66 = vld [vmem:[%s0 + $0x68] sm:$0xff]
  %v67 = vld [vmem:[%s0 + $0x70] sm:$0xff]
  %v68 = vld [vmem:[%s0 + $0x78] sm:$0xff]
  %v69 = vpack.c.bf16 %v54, %v53
  %v70 = vpack.c.bf16 %v56, %v55
  %v71 = vpack.c.bf16 %v58, %v57
  %v72 = vpack.c.bf16 %v60, %v59
  %v73 = vpack.c.bf16 %v62, %v61
  %v74 = vpack.c.bf16 %v64, %v63
  %v75 = vpack.c.bf16 %v66, %v65
  %v76 = vpack.c.bf16 %v68, %v67
  %78 = vset.pattern.permute.xlu0 0
  %79 = vperm.xlu0 %78, %v36
  %v80 = vpop.permute.xlu0 %79
  %83 = vset.pattern.permute.xlu0 0
  %84 = vperm.xlu0 %83, %v37
  %v85 = vpop.permute.xlu0 %84
  %88 = vset.pattern.permute.xlu0 0
  %89 = vperm.xlu0 %88, %v38
  %v90 = vpop.permute.xlu0 %89
  %93 = vset.pattern.permute.xlu0 0
  %94 = vperm.xlu0 %93, %v39
  %v95 = vpop.permute.xlu0 %94
  %98 = vset.pattern.permute.xlu0 0
  %99 = vperm.xlu0 %98, %v40
  %v100 = vpop.permute.xlu0 %99
  %103 = vset.pattern.permute.xlu0 0
  %104 = vperm.xlu0 %103, %v41
  %v105 = vpop.permute.xlu0 %104
  %108 = vset.pattern.permute.xlu0 0
  %109 = vperm.xlu0 %108, %v42
  %v110 = vpop.permute.xlu0 %109
  %v119 = vunpack.c.l.b16 %v29
  %v120 = vunpack.c.l.b16 %v30
  %v121 = vunpack.c.l.b16 %v31
  %v122 = vunpack.c.l.b16 %v32
  %v123 = vunpack.c.l.b16 %v33
  %v124 = vunpack.c.l.b16 %v34
  %v125 = vunpack.c.l.b16 %v35
  %v126 = vpack.c.b16 %v120, %v119
  %v127 = vpack.c.b16 %v122, %v121
  %v128 = vpack.c.b16 %v124, %v123
  %v129 = vpack.c.b16 %v125, %v125
  %vm130 = vcmask 261120
  %v132 = vsel %vm130, %v126, 0
  %v135 = vsel %vm130, %v127, 0
  %v138 = vsel %vm130, %v128, 0
  %v141 = vsel %vm130, %v129, 0
  %v144 = vsel %vm130, %v69, 0
  %v147 = vsel %vm130, %v70, 0
  %v150 = vsel %vm130, %v71, 0
  %v153 = vsel %vm130, %v72, 0
  %v156 = vsel %vm130, %v73, 0
  %v159 = vsel %vm130, %v74, 0
  %v162 = vsel %vm130, %v75, 0
  %v165 = vsel %vm130, %v76, 0
  %167 = vmatprep.subr.bf16.mxu0 0
  %168 = vmatpush1.bf16.xpose.msra.mxu0 %v165
  %169 = vmatprep.subr.bf16.mxu0 0
  %170 = vmatpush1.bf16.xpose.msra.mxu0 %v162
  %171 = vmatprep.subr.bf16.mxu0 0
  %172 = vmatpush1.bf16.xpose.msra.mxu0 %v159
  %173 = vmatprep.subr.bf16.mxu0 0
  %174 = vmatpush1.bf16.xpose.msra.mxu0 %v156
  %175 = vmatprep.subr.bf16.mxu0 0
  %176 = vmatpush1.bf16.xpose.msra.mxu0 %v153
  %177 = vmatprep.subr.bf16.mxu0 0
  %178 = vmatpush1.bf16.xpose.msra.mxu0 %v150
  %179 = vmatprep.subr.bf16.mxu0 0
  %180 = vmatpush1.bf16.xpose.msra.mxu0 %v147
  %181 = vmatprep.subr.bf16.mxu0 0
  %182 = vmatpush1.bf16.xpose.msra.mxu0 %v144
  %183 = vmatprep.subr.bf16.mxu0 0
  %184 = vmatpush2.bf16.xpose.msra.mxu0 0
  %185 = vmatprep.subr.bf16.mxu0 0
  %186 = vmatpush2.bf16.xpose.msra.mxu0 0
  %187 = vmatprep.subr.bf16.mxu0 0
  %188 = vmatpush2.bf16.xpose.msra.mxu0 0
  %189 = vmatprep.subr.bf16.mxu0 0
  %190 = vmatpush2.bf16.xpose.msra.mxu0 0
  %191 = vmatprep.subr.bf16.mxu0 0
  %192 = vmatpush2.bf16.xpose.msra.mxu0 0
  %193 = vmatprep.subr.bf16.mxu0 0
  %194 = vmatpush2.bf16.xpose.msra.mxu0 0
  %195 = vmatprep.subr.bf16.mxu0 0
  %196 = vmatpush2.bf16.xpose.msra.mxu0 0
  %197 = vmatprep.subr.bf16.mxu0 0
  %198 = vmatpush2.bf16.xpose.msra.mxu0 0
  %199 = vmatprep.mubr.bf16.mxu0 0
  %200 = vmatmul.mubr.bf16.gmra.mxu0 %v132
  %v201 = vpop.f32.mrf.mxu0
  %v202 = vadd.f32 %v80, %v201
  %v203 = vpop.f32.mrf.mxu0
  %v204 = vpop.f32.mrf.mxu0
  %v205 = vadd.f32 %v85, %v204
  %v206 = vpop.f32.mrf.mxu0
  %207 = vmatprep.mubr.bf16.mxu0 0
  %208 = vmatmul.mubr.bf16.gmra.mxu0 %v135
  %v209 = vpop.f32.mrf.mxu0
  %v210 = vadd.f32 %v90, %v209
  %v211 = vpop.f32.mrf.mxu0
  %v212 = vpop.f32.mrf.mxu0
  %v213 = vadd.f32 %v95, %v212
  %v214 = vpop.f32.mrf.mxu0
  %215 = vmatprep.mubr.bf16.mxu0 0
  %216 = vmatmul.mubr.bf16.gmra.mxu0 %v138
  %v217 = vpop.f32.mrf.mxu0
  %v218 = vadd.f32 %v100, %v217
  %v219 = vpop.f32.mrf.mxu0
  %v220 = vpop.f32.mrf.mxu0
  %v221 = vadd.f32 %v105, %v220
  %v222 = vpop.f32.mrf.mxu0
  %223 = vmatprep.mubr.bf16.mxu0 0
  %224 = vmatmul.mubr.bf16.gmra.mxu0 %v141
  %v225 = vpop.f32.mrf.mxu0
  %v226 = vadd.f32 %v110, %v225
  %v227 = vpop.f32.mrf.mxu0
  %v228 = vpop.f32.mrf.mxu0
  %v229 = vpop.f32.mrf.mxu0
  %230 = vdwg.mxu0
  %v231 = vmax.f32 %v202, 0.0
  %v232 = vmax.f32 %v205, 0.0
  %v233 = vmax.f32 %v210, 0.0
  %v234 = vmax.f32 %v213, 0.0
  %v235 = vmax.f32 %v218, 0.0
  %v236 = vmax.f32 %v221, 0.0
  %v237 = vmax.f32 %v226, 0.0
  %v238 = vpack.c.bf16 %v232, %v231
  %v239 = vpack.c.bf16 %v234, %v233
  %v240 = vpack.c.bf16 %v236, %v235
  %v241 = vpack.c.bf16 %v237, %v237
  %243 = vset.pattern.permute.xlu0 0
  %244 = vperm.xlu0 %243, %v47
  %v245 = vpop.permute.xlu0 %244
  %248 = vset.pattern.permute.xlu0 0
  %249 = vperm.xlu0 %248, %v48
  %v250 = vpop.permute.xlu0 %249
  %253 = vset.pattern.permute.xlu0 0
  %254 = vperm.xlu0 %253, %v49
  %v255 = vpop.permute.xlu0 %254
  %258 = vset.pattern.permute.xlu0 0
  %259 = vperm.xlu0 %258, %v50
  %v260 = vpop.permute.xlu0 %259
  %v266 = vunpack.c.l.b16 %v43
  %v267 = vunpack.c.l.b16 %v44
  %v268 = vunpack.c.l.b16 %v45
  %v269 = vunpack.c.l.b16 %v46
  %v270 = vpack.c.b16 %v267, %v266
  %v271 = vpack.c.b16 %v269, %v268
  %vm272 = vcmask 408576
  %v274 = vsel %vm272, %v270, 0
  %v277 = vsel %vm272, %v271, 0
  %vm279 = vcmask 1040384
  %v281 = vsel %vm279, %v241, 0
  %283 = vmatprep.subr.bf16.mxu0 0
  %284 = vmatpush1.bf16.msra.mxu0 0
  %285 = vmatprep.subr.bf16.mxu0 0
  %286 = vmatpush1.bf16.msra.mxu0 0
  %287 = vmatprep.subr.bf16.mxu0 0
  %288 = vmatpush1.bf16.msra.mxu0 0
  %289 = vmatprep.subr.bf16.mxu0 0
  %290 = vmatpush1.bf16.msra.mxu0 0
  %291 = vmatprep.subr.bf16.mxu0 0
  %292 = vmatpush1.bf16.msra.mxu0 %v281
  %293 = vmatprep.subr.bf16.mxu0 0
  %294 = vmatpush1.bf16.msra.mxu0 %v240
  %295 = vmatprep.subr.bf16.mxu0 0
  %296 = vmatpush1.bf16.msra.mxu0 %v239
  %297 = vmatprep.subr.bf16.mxu0 0
  %298 = vmatpush1.bf16.msra.mxu0 %v238
  %299 = vmatprep.subr.bf16.mxu0 0
  %300 = vmatpush2.bf16.msra.mxu0 0
  %301 = vmatprep.subr.bf16.mxu0 0
  %302 = vmatpush2.bf16.msra.mxu0 0
  %303 = vmatprep.subr.bf16.mxu0 0
  %304 = vmatpush2.bf16.msra.mxu0 0
  %305 = vmatprep.subr.bf16.mxu0 0
  %306 = vmatpush2.bf16.msra.mxu0 0
  %307 = vmatprep.subr.bf16.mxu0 0
  %308 = vmatpush2.bf16.msra.mxu0 0
  %309 = vmatprep.subr.bf16.mxu0 0
  %310 = vmatpush2.bf16.msra.mxu0 0
  %311 = vmatprep.subr.bf16.mxu0 0
  %312 = vmatpush2.bf16.msra.mxu0 0
  %313 = vmatprep.subr.bf16.mxu0 0
  %314 = vmatpush2.bf16.msra.mxu0 0
  %315 = vmatprep.mubr.bf16.mxu0 0
  %316 = vmatmul.mubr.bf16.gmra.mxu0 %v274
  %v317 = vpop.f32.mrf.mxu0
  %v318 = vadd.f32 %v245, %v317
  %v319 = vpop.f32.mrf.mxu0
  %v320 = vpop.f32.mrf.mxu0
  %v321 = vadd.f32 %v250, %v320
  %v322 = vpop.f32.mrf.mxu0
  %323 = vmatprep.mubr.bf16.mxu0 0
  %324 = vmatmul.mubr.bf16.gmra.mxu0 %v277
  %v325 = vpop.f32.mrf.mxu0
  %v326 = vadd.f32 %v255, %v325
  %v327 = vpop.f32.mrf.mxu0
  %v328 = vpop.f32.mrf.mxu0
  %v329 = vadd.f32 %v260, %v328
  %v330 = vpop.f32.mrf.mxu0
  %331 = vdwg.mxu0
  %v332 = vmax.f32 %v318, 0.0
  %v333 = vmax.f32 %v321, 0.0
  %v334 = vmax.f32 %v326, 0.0
  %v335 = vmax.f32 %v329, 0.0
  %v336 = vpack.c.bf16 %v333, %v332
  %v337 = vpack.c.bf16 %v335, %v334
  %339 = vset.pattern.permute.xlu0 0
  %340 = vperm.xlu0 %339, %v52
  %v341 = vpop.permute.xlu0 %340
  %v343 = vlaneseq
  %v344 = vshrl.u32 %v343, 7
  %v345 = vsub.s32 0, %v344
  %v346 = vrot.slane %v341, %v345
  %vm347 = vcmask 203776
  %v349 = vsel %vm347, %v51, 0
  %vm351 = vcmask 1043456
  %vm352 = vcmask 1044480
  %v353 = vsel %vm351, 4294967295, 65535
  %v354 = vsel %vm352, %v353, 0
  %v356 = vand.u32 %v337, %v354
  %358 = vmatprep.subr.bf16.mxu0 0
  %359 = vmatpush1.bf16.msra.mxu0 0
  %360 = vmatprep.subr.bf16.mxu0 0
  %361 = vmatpush1.bf16.msra.mxu0 0
  %362 = vmatprep.subr.bf16.mxu0 0
  %363 = vmatpush1.bf16.msra.mxu0 0
  %364 = vmatprep.subr.bf16.mxu0 0
  %365 = vmatpush1.bf16.msra.mxu0 0
  %366 = vmatprep.subr.bf16.mxu0 0
  %367 = vmatpush1.bf16.msra.mxu0 0
  %368 = vmatprep.subr.bf16.mxu0 0
  %369 = vmatpush1.bf16.msra.mxu0 0
  %370 = vmatprep.subr.bf16.mxu0 0
  %371 = vmatpush1.bf16.msra.mxu0 %v356
  %372 = vmatprep.subr.bf16.mxu0 0
  %373 = vmatpush1.bf16.msra.mxu0 %v336
  %374 = vmatprep.subr.bf16.mxu0 0
  %375 = vmatpush2.bf16.msra.mxu0 0
  %376 = vmatprep.subr.bf16.mxu0 0
  %377 = vmatpush2.bf16.msra.mxu0 0
  %378 = vmatprep.subr.bf16.mxu0 0
  %379 = vmatpush2.bf16.msra.mxu0 0
  %380 = vmatprep.subr.bf16.mxu0 0
  %381 = vmatpush2.bf16.msra.mxu0 0
  %382 = vmatprep.subr.bf16.mxu0 0
  %383 = vmatpush2.bf16.msra.mxu0 0
  %384 = vmatprep.subr.bf16.mxu0 0
  %385 = vmatpush2.bf16.msra.mxu0 0
  %386 = vmatprep.subr.bf16.mxu0 0
  %387 = vmatpush2.bf16.msra.mxu0 0
  %388 = vmatprep.subr.bf16.mxu0 0
  %389 = vmatpush2.bf16.msra.mxu0 0
  %390 = vmatprep.mubr.bf16.mxu0 0
  %391 = vmatmul.mubr.bf16.gmra.mxu0 %v349
  %v392 = vpop.f32.mrf.mxu0
  %v393 = vadd.f32 %v346, %v392
  %v394 = vpop.f32.mrf.mxu0
  %v395 = vpop.f32.mrf.mxu0
  %v396 = vpop.f32.mrf.mxu0
  %397 = vdwg.mxu0
  %398 = vst [vmem:[%s7] sm:$0x1] %v393
  // Predicated region
  $region30: #{ffnn_forward.1} parent=0 // pred_check
    _
  $region31: #{ffnn_forward.1} parent=0 // pred_check_branch
    %400 = sbr.rel (0) target = $region33
  $region32: #{ffnn_forward.1} parent=0 // pred_region
    _
  $region33: #{ffnn_forward.1} parent=0 // pred_fallthru
    _
  // Predicated region
  $region34: #{ffnn_forward.1} parent=0 // pred_check
    _
  $region35: #{ffnn_forward.1} parent=0 // pred_check_branch
    %402 = sbr.rel (0) target = $region37
  $region36: #{ffnn_forward.1} parent=0 // pred_region
    _
  $region37: #{ffnn_forward.1} parent=0 // pred_fallthru
    _

</llo_original>
